<compile_context>
chip_gen: v5e
topology: v5e:2x2
jax: 0.10.0
libtpu: 0.0.40
codegen_flags: <defaults>
</compile_context>

<pallas_src>
import functools

import jax
import jax.numpy as jnp
from jax.experimental import pallas as pl
from jax.experimental.pallas import tpu as pltpu


def _round_up(x, m):
    return (x + m - 1) // m * m


def _vmem_block_bytes(TT, BB, Hp):
    """Rough per-call VMEM footprint (every block double-buffered)."""
    gates = TT * BB * 4 * Hp * 2          # bf16
    keep = TT * BB * 1 * 4                # f32
    h0 = 2 * BB * Hp * 4
    whh = Hp * 4 * Hp * 4
    bias = 8 * 4 * Hp * 4                 # (1, 4Hp) padded to 8 sublanes
    out = TT * BB * Hp * 4
    hfin = 2 * BB * Hp * 4
    return 2 * (gates + keep + h0 + whh + bias + out + hfin)


def _lstm_chunk_kernel(g_ref, k_ref, h0_ref, whh_ref, b_ref, out_ref, hfin_ref,
                       *, seq_len, mask_tail, unroll):
    """One grid step = one (batch block, time chunk).

    g_ref   : (TT, BB, 4*Hp) bf16  precomputed x @ W_ih, gate order [i, f, o, g]
    k_ref   : (TT, BB, 1)    f32   keep mask = 1 - done
    h0_ref  : (2, BB, Hp)    f32   initial [h; c] for this batch block
    whh_ref : (Hp, 4*Hp)     f32   fused recurrent weights
    b_ref   : (1, 4*Hp)      f32   fused bias (b_ih + b_hh)
    out_ref : (TT, BB, Hp)   f32   per-step h outputs (time-major, lane-dense)
    hfin_ref: (2, BB, Hp)    f32   carried / final [h; c] (resident across chunks)
    """
    chunk = pl.program_id(1)

    # Load the initial hidden state into the resident output block once per batch block.
    @pl.when(chunk == 0)
    def _():
        hfin_ref[...] = h0_ref[...]

    TT = g_ref.shape[0]
    Hp = hfin_ref.shape[2]

    whh = whh_ref[...]                     # hoisted out of the time loop
    bias = b_ref[...]                      # (1, 4*Hp) f32, broadcasts over BB

    def step(tt, h, c):
        keep_t = k_ref[tt]                 # (BB, 1) f32
        h = h * keep_t                     # reset_state as one vmul per array
        c = c * keep_t

        # Single fused recurrent matmul (f32 x f32 -> f32); gates loaded bf16,
        # promoted to f32 before the bias add so error doesn't compound.
        pre = g_ref[tt].astype(jnp.float32) + bias + jnp.dot(
            h, whh, preferred_element_type=jnp.float32)            # (BB, 4*Hp)

        # Gate order [i, f, o, g]; sigmoid(x) = 0.5*tanh(0.5*x) + 0.5 (one EUP slab).
        sig = 0.5 * jnp.tanh(0.5 * pre[:, : 3 * Hp]) + 0.5
        i_g = sig[:, 0:Hp]
        f_g = sig[:, Hp:2 * Hp]
        o_g = sig[:, 2 * Hp:3 * Hp]
        g_g = jnp.tanh(pre[:, 3 * Hp:])

        c_new = f_g * c + i_g * g_g
        h_new = o_g * jnp.tanh(c_new)

        if mask_tail:                      # static: only when T was padded up to T_pad
            valid = (chunk * TT + tt) < seq_len
            h_new = jnp.where(valid, h_new, h)
            c_new = jnp.where(valid, c_new, c)

        out_ref[tt] = h_new                # time-major -> full sublane/lane-dense store
        return h_new, c_new

    def body(jj, carry):
        h, c = carry
        for u in range(unroll):            # modest manual unroll inside fori_loop
            h, c = step(jj * unroll + u, h, c)
        return h, c

    h, c = jax.lax.fori_loop(0, TT // unroll, body,
                             (hfin_ref[0], hfin_ref[1]))

    # Keep the resident final-hidden block valid after every chunk.
    hfin_ref[0] = h
    hfin_ref[1] = c


def rnn_lstm_pallas(x, hidden, done, w_ih, w_hh, b_ih, b_hh):
    """LSTM branch of RNN.forward.

    x      : (B, T, F) or (B, F)
    hidden : (B, 2H) concatenated [h, c]  (LSTMCell.zero_state layout)
    done   : (B, T) or (B,) bool/float done flags
    w_ih   : (4H, F), w_hh: (4H, H), b_ih/b_hh: (4H,) — torch.nn.LSTMCell layout,
             gate order (i, f, g, o).
    Returns (outputs, hidden_out): outputs (B, T, H) (or (B, H) on the squeeze
    path), hidden_out (B, 2H).
    """
    squeeze = (x.ndim == 2 and done.ndim == 1)
    if squeeze:
        x = x[:, None, :]
        done = done[:, None]

    B, T, F = x.shape
    H = w_hh.shape[1]
    Hp = _round_up(H, 128)                       # lane-dense hidden dim

    if B <= 128:
        B_pad = _round_up(B, 8)
        BB = B_pad
    else:
        B_pad = _round_up(B, 128)
        BB = 128
    # TODO(synk): on v7x (2 TensorCores) split B_pad into >=2 batch blocks when B
    # allows so the "parallel" batch axis is actually sharded across both cores.

    # Time-chunk length: biggest of (32, 16, 8) that fits a ~40 MiB VMEM budget
    # (safe for v7x's 64 MiB physical VMEM). T is padded to a multiple of TT and
    # the padded tail steps are masked out of the carried state in the kernel.
    if T <= 8:
        TT = T
    else:
        TT = 8
        for cand in (32, 16, 8):
            if _vmem_block_bytes(cand, BB, Hp) <= 40 * 1024 * 1024:
                TT = cand
                break
        TT = min(TT, _round_up(T, 8))
    T_pad = _round_up(T, TT)
    nb, nt = B_pad // BB, T_pad // TT

    unroll = 1
    for cand in (4, 2, 1):
        if TT % cand == 0:
            unroll = cand
            break

    # ---- fuse + pad weights to (in_dim, 4*Hp), gate order -> [i, f, o, g] ----
    perm = jnp.array([0, 1, 3, 2])

    def fuse(w, in_dim):
        w = w.reshape(4, H, in_dim)[perm]                    # (4, H, in)
        w = jnp.transpose(w, (2, 0, 1))                      # (in, 4, H)
        w = jnp.pad(w, ((0, 0), (0, 0), (0, Hp - H)))        # pad H -> Hp
        return w.reshape(in_dim, 4 * Hp)

    wih_f = fuse(w_ih.astype(jnp.float32), F)                                # (F, 4*Hp)
    whh_f = jnp.pad(fuse(w_hh.astype(jnp.float32), H), ((0, Hp - H), (0, 0)))  # (Hp, 4*Hp)
    b_f = jnp.pad((b_ih + b_hh).astype(jnp.float32).reshape(4, H)[perm],
                  ((0, 0), (0, Hp - H))).reshape(1, 4 * Hp)                  # (1, 4*Hp)

    # ---- hoist the input projection out of the recurrence (time-major gates) ----
    # f32 x f32 matmul (runs on every backend); stored bf16 to halve HBM traffic
    # and the largest VMEM block. Bias is added in f32 inside the kernel.
    x_p = jnp.pad(x.astype(jnp.float32), ((0, B_pad - B), (0, 0), (0, 0)))
    gates = jnp.einsum('btf,fk->tbk', x_p, wih_f).astype(jnp.bfloat16)
    gates = jnp.pad(gates, ((0, T_pad - T), (0, 0), (0, 0)))                 # (T_pad, B_pad, 4*Hp)

    keep = 1.0 - done.astype(jnp.float32)                                    # reset as a mult mask
    keep = jnp.pad(keep, ((0, B_pad - B), (0, T_pad - T)), constant_values=1.0)
    keep_tm = jnp.transpose(keep, (1, 0))[:, :, None]                        # (T_pad, B_pad, 1)

    h0 = jnp.stack([
        jnp.pad(hidden[:, :H], ((0, B_pad - B), (0, Hp - H))),
        jnp.pad(hidden[:, H:], ((0, B_pad - B), (0, Hp - H))),
    ]).astype(jnp.float32)                                                   # (2, B_pad, Hp)

    est = _vmem_block_bytes(TT, BB, Hp)
    vmem_limit = int(min(max(est * 3 // 2 + (2 << 20), 16 << 20), 60 << 20))

    kernel = functools.partial(_lstm_chunk_kernel, seq_len=T,
                               mask_tail=(T_pad != T), unroll=unroll)

    out_tm, hfin = pl.pallas_call(
        kernel,
        out_shape=(
            jax.ShapeDtypeStruct((T_pad, B_pad, Hp), jnp.float32),
            jax.ShapeDtypeStruct((2, B_pad, Hp), jnp.float32),
        ),
        grid_spec=pltpu.PrefetchScalarGridSpec(
            num_scalar_prefetch=0,
            grid=(nb, nt),
            in_specs=[
                pl.BlockSpec((TT, BB, 4 * Hp), lambda b, t: (t, b, 0)),  # gates (bf16)
                pl.BlockSpec((TT, BB, 1), lambda b, t: (t, b, 0)),       # keep mask
                pl.BlockSpec((2, BB, Hp), lambda b, t: (0, b, 0)),       # h0
                pl.BlockSpec((Hp, 4 * Hp), lambda b, t: (0, 0)),         # W_hh (fused)
                pl.BlockSpec((1, 4 * Hp), lambda b, t: (0, 0)),          # bias
            ],
            out_specs=[
                pl.BlockSpec((TT, BB, Hp), lambda b, t: (t, b, 0)),      # outputs (time-major)
                pl.BlockSpec((2, BB, Hp), lambda b, t: (0, b, 0)),       # final [h; c]
            ],
        ),
        compiler_params=pltpu.CompilerParams(
            dimension_semantics=("parallel", "arbitrary"),  # batch parallel, time serial
            vmem_limit_bytes=vmem_limit,
        ),
        # h0 buffer reused for the final hidden. Safe because time is the MINOR
        # grid axis: h0 block b is consumed at chunk 0 before hfin block b is
        # written back, and different batch blocks occupy disjoint regions.
        input_output_aliases={2: 1},
    )(gates, keep_tm, h0, whh_f, b_f)

    out = jnp.transpose(out_tm[:T, :B, :H], (1, 0, 2))                       # (B, T, H)
    hidden_out = jnp.concatenate([hfin[0, :B, :H], hfin[1, :B, :H]], axis=1)
    if squeeze:
        out = out[:, 0]
    return out, hidden_out


def rnn_lstm_reference(x, hidden, done, w_ih, w_hh, b_ih, b_hh):
    """Pure-JAX f32 reference mirroring the PyTorch rnn_loop semantics."""
    H = w_hh.shape[1]

    def step(hid, inputs):
        x_t, d_t = inputs
        hid = jnp.where(d_t[:, None], jnp.zeros_like(hid), hid)
        h, c = hid[:, :H], hid[:, H:]
        gates = x_t @ w_ih.T + b_ih + h @ w_hh.T + b_hh        # (B, 4H), order i,f,g,o
        i_g, f_g, g_g, o_g = jnp.split(gates, 4, axis=1)
        c_new = jax.nn.sigmoid(f_g) * c + jax.nn.sigmoid(i_g) * jnp.tanh(g_g)
        h_new = jax.nn.sigmoid(o_g) * jnp.tanh(c_new)
        return jnp.concatenate([h_new, c_new], axis=1), h_new

    hid_final, outs = jax.lax.scan(
        step, hidden,
        (jnp.transpose(x, (1, 0, 2)), jnp.transpose(done, (1, 0))))
    return jnp.transpose(outs, (1, 0, 2)), hid_final


if __name__ == "__main__":
    B, T, F, H = 2, 8, 4, 32

    key = jax.random.PRNGKey(0)
    kx, kh, kd, k1, k2, k3, k4 = jax.random.split(key, 7)

    # nn.LSTMCell-shaped parameters, uniform(-1/sqrt(H), 1/sqrt(H)), gate order i,f,g,o.
    bound = 1.0 / jnp.sqrt(jnp.float32(H))
    w_ih = jax.random.uniform(k1, (4 * H, F), jnp.float32, -bound, bound)
    w_hh = jax.random.uniform(k2, (4 * H, H), jnp.float32, -bound, bound)
    b_ih = jax.random.uniform(k3, (4 * H,), jnp.float32, -bound, bound)
    b_hh = jax.random.uniform(k4, (4 * H,), jnp.float32, -bound, bound)

    x = jax.random.normal(kx, (B, T, F), jnp.float32)
    hidden = jax.random.normal(kh, (B, 2 * H), jnp.float32)   # LSTMCell state [h; c]
    done = jax.random.bernoulli(kd, 0.25, (B, T))             # bool done flags

    out, hid = jax.jit(rnn_lstm_pallas)(x, hidden, done, w_ih, w_hh, b_ih, b_hh)
    jax.block_until_ready((out, hid))

    out_ref, hid_ref = rnn_lstm_reference(x, hidden, done, w_ih, w_hh, b_ih, b_hh)
    assert out.shape == (B, T, H) and hid.shape == (B, 2 * H)
    # Gates are stored in bf16 (f32 accumulation / f32 elementwise everywhere else),
    # so compare against the f32 reference with a bf16-appropriate tolerance.
    assert jnp.allclose(out, out_ref, atol=5e-2), (
        "output mismatch: max |diff| = %g" % float(jnp.max(jnp.abs(out - out_ref))))
    assert jnp.allclose(hid, hid_ref, atol=5e-2), (
        "hidden mismatch: max |diff| = %g" % float(jnp.max(jnp.abs(hid - hid_ref))))

    print("KERNEL_OK")
</pallas_src>

<mosaic_0001>
module attributes {stable_mosaic.version = 11 : i64} {
  func.func @_lstm_chunk_kernel(%arg0: i32, %arg1: i32, %arg2: memref<8x8x512xbf16, #tpu.memory_space<vmem>>, %arg3: memref<8x8x1xf32, #tpu.memory_space<vmem>>, %arg4: memref<2x8x128xf32, #tpu.memory_space<vmem>>, %arg5: memref<128x512xf32, #tpu.memory_space<vmem>>, %arg6: memref<1x512xf32, #tpu.memory_space<vmem>>, %arg7: memref<8x8x128xf32, #tpu.memory_space<vmem>>, %arg8: memref<2x8x128xf32, #tpu.memory_space<vmem>>) attributes {dimension_semantics = [#tpu.dimension_semantics<parallel>, #tpu.dimension_semantics<arbitrary>], iteration_bounds = array<i64: 1, 1>, scalar_prefetch = 0 : i64, scratch_operands = 0 : i64, tpu.core_type = #tpu.core_type<tc>, window_params = [{transform_indices = @transform_0, window_bounds = array<i64: 8, 8, 512>}, {transform_indices = @transform_1, window_bounds = array<i64: 8, 8, 1>}, {transform_indices = @transform_2, window_bounds = array<i64: 2, 8, 128>}, {pipeline_mode = #tpu.pipeline_mode<synchronous>, transform_indices = @transform_3, window_bounds = array<i64: 128, 512>}, {pipeline_mode = #tpu.pipeline_mode<synchronous>, transform_indices = @transform_4, window_bounds = array<i64: 1, 512>}, {transform_indices = @transform_5, window_bounds = array<i64: 8, 8, 128>}, {transform_indices = @transform_6, window_bounds = array<i64: 2, 8, 128>}]} {
    %c0_i32 = arith.constant 0 : i32
    %0 = arith.cmpi eq, %arg1, %c0_i32 : i32
    %1 = arith.extui %0 : i1 to i32
    %c0_i32_0 = arith.constant 0 : i32
    %2 = arith.cmpi ne, %1, %c0_i32_0 : i32
    scf.if %2 {
      %c0_17 = arith.constant 0 : index
      %c0_18 = arith.constant 0 : index
      %c0_19 = arith.constant 0 : index
      %17 = vector.load %arg4[%c0_17, %c0_18, %c0_19] : memref<2x8x128xf32, #tpu.memory_space<vmem>>, vector<2x8x128xf32>
      %c0_20 = arith.constant 0 : index
      %c0_21 = arith.constant 0 : index
      %c0_22 = arith.constant 0 : index
      %18 = vector.load %arg8[%c0_20, %c0_21, %c0_22] : memref<2x8x128xf32, #tpu.memory_space<vmem>>, vector<2x8x128xf32>
      tpu.vector_store %arg8[%c0_20, %c0_21, %c0_22], %17 {strides = array<i32>} : memref<2x8x128xf32, #tpu.memory_space<vmem>>, vector<2x8x128xf32>,
    } else {
    }
    %c0 = arith.constant 0 : index
    %c0_1 = arith.constant 0 : index
    %3 = vector.load %arg5[%c0, %c0_1] : memref<128x512xf32, #tpu.memory_space<vmem>>, vector<128x512xf32>
    %c0_2 = arith.constant 0 : index
    %c0_3 = arith.constant 0 : index
    %4 = vector.load %arg6[%c0_2, %c0_3] : memref<1x512xf32, #tpu.memory_space<vmem>>, vector<1x512xf32>
    %c0_4 = arith.constant 0 : index
    %c0_5 = arith.constant 0 : index
    %c0_6 = arith.constant 0 : index
    %5 = vector.load %arg8[%c0_4, %c0_5, %c0_6] : memref<2x8x128xf32, #tpu.memory_space<vmem>>, vector<1x8x128xf32>
    %6 = vector.shape_cast %5 : vector<1x8x128xf32> to vector<8x128xf32>
    %c1 = arith.constant 1 : index
    %c0_7 = arith.constant 0 : index
    %c0_8 = arith.constant 0 : index
    %7 = vector.load %arg8[%c1, %c0_7, %c0_8] : memref<2x8x128xf32, #tpu.memory_space<vmem>>, vector<1x8x128xf32>
    %8 = vector.shape_cast %7 : vector<1x8x128xf32> to vector<8x128xf32>
    %c0_i32_9 = arith.constant 0 : i32
    %c2_i32 = arith.constant 2 : i32
    %9 = arith.addi %c0_i32_9, %c2_i32 : i32
    %c1_i32 = arith.constant 1 : i32
    %10:2 = scf.for %arg9 = %c0_i32_9 to %9 step %c1_i32 iter_args(%arg10 = %6, %arg11 = %8) -> (vector<8x128xf32>, vector<8x128xf32>)  : i32 {
      %c4_i32 = arith.constant 4 : i32
      %17 = arith.muli %arg9, %c4_i32 : i32
      %c0_i32_17 = arith.constant 0 : i32
      %18 = arith.addi %17, %c0_i32_17 : i32
      %19 = arith.index_cast %18 : i32 to index
      %c0_18 = arith.constant 0 : index
      %c0_19 = arith.constant 0 : index
      %20 = vector.load %arg3[%19, %c0_18, %c0_19] : memref<8x8x1xf32, #tpu.memory_space<vmem>>, vector<1x8x1xf32>
      %21 = vector.shape_cast %20 : vector<1x8x1xf32> to vector<8x1xf32>
      %22 = vector.broadcast %21 : vector<8x1xf32> to vector<8x128xf32>
      %23 = arith.mulf %arg10, %22 : vector<8x128xf32>
      %24 = vector.broadcast %21 : vector<8x1xf32> to vector<8x128xf32>
      %25 = arith.mulf %arg11, %24 : vector<8x128xf32>
      %26 = arith.index_cast %18 : i32 to index
      %c0_20 = arith.constant 0 : index
      %c0_21 = arith.constant 0 : index
      %27 = vector.load %arg2[%26, %c0_20, %c0_21] : memref<8x8x512xbf16, #tpu.memory_space<vmem>>, vector<1x8x512xbf16>
      %28 = vector.shape_cast %27 : vector<1x8x512xbf16> to vector<8x512xbf16>
      %29 = arith.extf %28 : vector<8x512xbf16> to vector<8x512xf32>
      %30 = vector.broadcast %4 : vector<1x512xf32> to vector<8x512xf32>
      %31 = arith.addf %29, %30 : vector<8x512xf32>
      %cst = arith.constant dense<0.000000e+00> : vector<8x512xf32>
      %32 = tpu.matmul %23, %3, %cst {dimension_numbers = #tpu.dot_dimension_numbers<[1], [0], [0], [1], [0, 0, 1, 1], [], []>} : vector<8x128xf32>, vector<128x512xf32>, vector<8x512xf32> -> vector<8x512xf32>
      %33 = arith.addf %31, %32 : vector<8x512xf32>
      %34 = vector.extract_strided_slice %33 {offsets = [0, 0], sizes = [8, 384], strides = [1, 1]} : vector<8x512xf32> to vector<8x384xf32>
      %cst_22 = arith.constant 5.000000e-01 : f32
      %35 = vector.broadcast %cst_22 : f32 to vector<8x384xf32>
      %36 = arith.mulf %35, %34 : vector<8x384xf32>
      %37 = math.tanh %36 : vector<8x384xf32>
      %cst_23 = arith.constant 5.000000e-01 : f32
      %38 = vector.broadcast %cst_23 : f32 to vector<8x384xf32>
      %39 = arith.mulf %38, %37 : vector<8x384xf32>
      %cst_24 = arith.constant 5.000000e-01 : f32
      %40 = vector.broadcast %cst_24 : f32 to vector<8x384xf32>
      %41 = arith.addf %39, %40 : vector<8x384xf32>
      %42 = vector.extract_strided_slice %41 {offsets = [0, 0], sizes = [8, 128], strides = [1, 1]} : vector<8x384xf32> to vector<8x128xf32>
      %43 = vector.extract_strided_slice %41 {offsets = [0, 128], sizes = [8, 128], strides = [1, 1]} : vector<8x384xf32> to vector<8x128xf32>
      %44 = vector.extract_strided_slice %41 {offsets = [0, 256], sizes = [8, 128], strides = [1, 1]} : vector<8x384xf32> to vector<8x128xf32>
      %45 = vector.extract_strided_slice %33 {offsets = [0, 384], sizes = [8, 128], strides = [1, 1]} : vector<8x512xf32> to vector<8x128xf32>
      %46 = math.tanh %45 : vector<8x128xf32>
      %47 = arith.mulf %43, %25 : vector<8x128xf32>
      %48 = arith.mulf %42, %46 : vector<8x128xf32>
      %49 = arith.addf %47, %48 : vector<8x128xf32>
      %50 = math.tanh %49 : vector<8x128xf32>
      %51 = arith.mulf %44, %50 : vector<8x128xf32>
      %52 = arith.index_cast %18 : i32 to index
      %c0_25 = arith.constant 0 : index
      %c0_26 = arith.constant 0 : index
      %53 = vector.load %arg7[%52, %c0_25, %c0_26] : memref<8x8x128xf32, #tpu.memory_space<vmem>>, vector<1x8x128xf32>
      %54 = vector.shape_cast %53 : vector<1x8x128xf32> to vector<8x128xf32>
      %55 = vector.shape_cast %51 : vector<8x128xf32> to vector<1x8x128xf32>
      tpu.vector_store %arg7[%52, %c0_25, %c0_26], %55 {strides = array<i32>} : memref<8x8x128xf32, #tpu.memory_space<vmem>>, vector<1x8x128xf32>,
      %c4_i32_27 = arith.constant 4 : i32
      %56 = arith.muli %arg9, %c4_i32_27 : i32
      %c1_i32_28 = arith.constant 1 : i32
      %57 = arith.addi %56, %c1_i32_28 : i32
      %58 = arith.index_cast %57 : i32 to index
      %c0_29 = arith.constant 0 : index
      %c0_30 = arith.constant 0 : index
      %59 = vector.load %arg3[%58, %c0_29, %c0_30] : memref<8x8x1xf32, #tpu.memory_space<vmem>>, vector<1x8x1xf32>
      %60 = vector.shape_cast %59 : vector<1x8x1xf32> to vector<8x1xf32>
      %61 = vector.broadcast %60 : vector<8x1xf32> to vector<8x128xf32>
      %62 = arith.mulf %51, %61 : vector<8x128xf32>
      %63 = vector.broadcast %60 : vector<8x1xf32> to vector<8x128xf32>
      %64 = arith.mulf %49, %63 : vector<8x128xf32>
      %65 = arith.index_cast %57 : i32 to index
      %c0_31 = arith.constant 0 : index
      %c0_32 = arith.constant 0 : index
      %66 = vector.load %arg2[%65, %c0_31, %c0_32] : memref<8x8x512xbf16, #tpu.memory_space<vmem>>, vector<1x8x512xbf16>
      %67 = vector.shape_cast %66 : vector<1x8x512xbf16> to vector<8x512xbf16>
      %68 = arith.extf %67 : vector<8x512xbf16> to vector<8x512xf32>
      %69 = vector.broadcast %4 : vector<1x512xf32> to vector<8x512xf32>
      %70 = arith.addf %68, %69 : vector<8x512xf32>
      %cst_33 = arith.constant dense<0.000000e+00> : vector<8x512xf32>
      %71 = tpu.matmul %62, %3, %cst_33 {dimension_numbers = #tpu.dot_dimension_numbers<[1], [0], [0], [1], [0, 0, 1, 1], [], []>} : vector<8x128xf32>, vector<128x512xf32>, vector<8x512xf32> -> vector<8x512xf32>
      %72 = arith.addf %70, %71 : vector<8x512xf32>
      %73 = vector.extract_strided_slice %72 {offsets = [0, 0], sizes = [8, 384], strides = [1, 1]} : vector<8x512xf32> to vector<8x384xf32>
      %cst_34 = arith.constant 5.000000e-01 : f32
      %74 = vector.broadcast %cst_34 : f32 to vector<8x384xf32>
      %75 = arith.mulf %74, %73 : vector<8x384xf32>
      %76 = math.tanh %75 : vector<8x384xf32>
      %cst_35 = arith.constant 5.000000e-01 : f32
      %77 = vector.broadcast %cst_35 : f32 to vector<8x384xf32>
      %78 = arith.mulf %77, %76 : vector<8x384xf32>
      %cst_36 = arith.constant 5.000000e-01 : f32
      %79 = vector.broadcast %cst_36 : f32 to vector<8x384xf32>
      %80 = arith.addf %78, %79 : vector<8x384xf32>
      %81 = vector.extract_strided_slice %80 {offsets = [0, 0], sizes = [8, 128], strides = [1, 1]} : vector<8x384xf32> to vector<8x128xf32>
      %82 = vector.extract_strided_slice %80 {offsets = [0, 128], sizes = [8, 128], strides = [1, 1]} : vector<8x384xf32> to vector<8x128xf32>
      %83 = vector.extract_strided_slice %80 {offsets = [0, 256], sizes = [8, 128], strides = [1, 1]} : vector<8x384xf32> to vector<8x128xf32>
      %84 = vector.extract_strided_slice %72 {offsets = [0, 384], sizes = [8, 128], strides = [1, 1]} : vector<8x512xf32> to vector<8x128xf32>
      %85 = math.tanh %84 : vector<8x128xf32>
      %86 = arith.mulf %82, %64 : vector<8x128xf32>
      %87 = arith.mulf %81, %85 : vector<8x128xf32>
      %88 = arith.addf %86, %87 : vector<8x128xf32>
      %89 = math.tanh %88 : vector<8x128xf32>
      %90 = arith.mulf %83, %89 : vector<8x128xf32>
      %91 = arith.index_cast %57 : i32 to index
      %c0_37 = arith.constant 0 : index
      %c0_38 = arith.constant 0 : index
      %92 = vector.load %arg7[%91, %c0_37, %c0_38] : memref<8x8x128xf32, #tpu.memory_space<vmem>>, vector<1x8x128xf32>
      %93 = vector.shape_cast %92 : vector<1x8x128xf32> to vector<8x128xf32>
      %94 = vector.shape_cast %90 : vector<8x128xf32> to vector<1x8x128xf32>
      tpu.vector_store %arg7[%91, %c0_37, %c0_38], %94 {strides = array<i32>} : memref<8x8x128xf32, #tpu.memory_space<vmem>>, vector<1x8x128xf32>,
      %c4_i32_39 = arith.constant 4 : i32
      %95 = arith.muli %arg9, %c4_i32_39 : i32
      %c2_i32_40 = arith.constant 2 : i32
      %96 = arith.addi %95, %c2_i32_40 : i32
      %97 = arith.index_cast %96 : i32 to index
      %c0_41 = arith.constant 0 : index
      %c0_42 = arith.constant 0 : index
      %98 = vector.load %arg3[%97, %c0_41, %c0_42] : memref<8x8x1xf32, #tpu.memory_space<vmem>>, vector<1x8x1xf32>
      %99 = vector.shape_cast %98 : vector<1x8x1xf32> to vector<8x1xf32>
      %100 = vector.broadcast %99 : vector<8x1xf32> to vector<8x128xf32>
      %101 = arith.mulf %90, %100 : vector<8x128xf32>
      %102 = vector.broadcast %99 : vector<8x1xf32> to vector<8x128xf32>
      %103 = arith.mulf %88, %102 : vector<8x128xf32>
      %104 = arith.index_cast %96 : i32 to index
      %c0_43 = arith.constant 0 : index
      %c0_44 = arith.constant 0 : index
      %105 = vector.load %arg2[%104, %c0_43, %c0_44] : memref<8x8x512xbf16, #tpu.memory_space<vmem>>, vector<1x8x512xbf16>
      %106 = vector.shape_cast %105 : vector<1x8x512xbf16> to vector<8x512xbf16>
      %107 = arith.extf %106 : vector<8x512xbf16> to vector<8x512xf32>
      %108 = vector.broadcast %4 : vector<1x512xf32> to vector<8x512xf32>
      %109 = arith.addf %107, %108 : vector<8x512xf32>
      %cst_45 = arith.constant dense<0.000000e+00> : vector<8x512xf32>
      %110 = tpu.matmul %101, %3, %cst_45 {dimension_numbers = #tpu.dot_dimension_numbers<[1], [0], [0], [1], [0, 0, 1, 1], [], []>} : vector<8x128xf32>, vector<128x512xf32>, vector<8x512xf32> -> vector<8x512xf32>
      %111 = arith.addf %109, %110 : vector<8x512xf32>
      %112 = vector.extract_strided_slice %111 {offsets = [0, 0], sizes = [8, 384], strides = [1, 1]} : vector<8x512xf32> to vector<8x384xf32>
      %cst_46 = arith.constant 5.000000e-01 : f32
      %113 = vector.broadcast %cst_46 : f32 to vector<8x384xf32>
      %114 = arith.mulf %113, %112 : vector<8x384xf32>
      %115 = math.tanh %114 : vector<8x384xf32>
      %cst_47 = arith.constant 5.000000e-01 : f32
      %116 = vector.broadcast %cst_47 : f32 to vector<8x384xf32>
      %117 = arith.mulf %116, %115 : vector<8x384xf32>
      %cst_48 = arith.constant 5.000000e-01 : f32
      %118 = vector.broadcast %cst_48 : f32 to vector<8x384xf32>
      %119 = arith.addf %117, %118 : vector<8x384xf32>
      %120 = vector.extract_strided_slice %119 {offsets = [0, 0], sizes = [8, 128], strides = [1, 1]} : vector<8x384xf32> to vector<8x128xf32>
      %121 = vector.extract_strided_slice %119 {offsets = [0, 128], sizes = [8, 128], strides = [1, 1]} : vector<8x384xf32> to vector<8x128xf32>
      %122 = vector.extract_strided_slice %119 {offsets = [0, 256], sizes = [8, 128], strides = [1, 1]} : vector<8x384xf32> to vector<8x128xf32>
      %123 = vector.extract_strided_slice %111 {offsets = [0, 384], sizes = [8, 128], strides = [1, 1]} : vector<8x512xf32> to vector<8x128xf32>
      %124 = math.tanh %123 : vector<8x128xf32>
      %125 = arith.mulf %121, %103 : vector<8x128xf32>
      %126 = arith.mulf %120, %124 : vector<8x128xf32>
      %127 = arith.addf %125, %126 : vector<8x128xf32>
      %128 = math.tanh %127 : vector<8x128xf32>
      %129 = arith.mulf %122, %128 : vector<8x128xf32>
      %130 = arith.index_cast %96 : i32 to index
      %c0_49 = arith.constant 0 : index
      %c0_50 = arith.constant 0 : index
      %131 = vector.load %arg7[%130, %c0_49, %c0_50] : memref<8x8x128xf32, #tpu.memory_space<vmem>>, vector<1x8x128xf32>
      %132 = vector.shape_cast %131 : vector<1x8x128xf32> to vector<8x128xf32>
      %133 = vector.shape_cast %129 : vector<8x128xf32> to vector<1x8x128xf32>
      tpu.vector_store %arg7[%130, %c0_49, %c0_50], %133 {strides = array<i32>} : memref<8x8x128xf32, #tpu.memory_space<vmem>>, vector<1x8x128xf32>,
      %c4_i32_51 = arith.constant 4 : i32
      %134 = arith.muli %arg9, %c4_i32_51 : i32
      %c3_i32 = arith.constant 3 : i32
      %135 = arith.addi %134, %c3_i32 : i32
      %136 = arith.index_cast %135 : i32 to index
      %c0_52 = arith.constant 0 : index
      %c0_53 = arith.constant 0 : index
      %137 = vector.load %arg3[%136, %c0_52, %c0_53] : memref<8x8x1xf32, #tpu.memory_space<vmem>>, vector<1x8x1xf32>
      %138 = vector.shape_cast %137 : vector<1x8x1xf32> to vector<8x1xf32>
      %139 = vector.broadcast %138 : vector<8x1xf32> to vector<8x128xf32>
      %140 = arith.mulf %129, %139 : vector<8x128xf32>
      %141 = vector.broadcast %138 : vector<8x1xf32> to vector<8x128xf32>
      %142 = arith.mulf %127, %141 : vector<8x128xf32>
      %143 = arith.index_cast %135 : i32 to index
      %c0_54 = arith.constant 0 : index
      %c0_55 = arith.constant 0 : index
      %144 = vector.load %arg2[%143, %c0_54, %c0_55] : memref<8x8x512xbf16, #tpu.memory_space<vmem>>, vector<1x8x512xbf16>
      %145 = vector.shape_cast %144 : vector<1x8x512xbf16> to vector<8x512xbf16>
      %146 = arith.extf %145 : vector<8x512xbf16> to vector<8x512xf32>
      %147 = vector.broadcast %4 : vector<1x512xf32> to vector<8x512xf32>
      %148 = arith.addf %146, %147 : vector<8x512xf32>
      %cst_56 = arith.constant dense<0.000000e+00> : vector<8x512xf32>
      %149 = tpu.matmul %140, %3, %cst_56 {dimension_numbers = #tpu.dot_dimension_numbers<[1], [0], [0], [1], [0, 0, 1, 1], [], []>} : vector<8x128xf32>, vector<128x512xf32>, vector<8x512xf32> -> vector<8x512xf32>
      %150 = arith.addf %148, %149 : vector<8x512xf32>
      %151 = vector.extract_strided_slice %150 {offsets = [0, 0], sizes = [8, 384], strides = [1, 1]} : vector<8x512xf32> to vector<8x384xf32>
      %cst_57 = arith.constant 5.000000e-01 : f32
      %152 = vector.broadcast %cst_57 : f32 to vector<8x384xf32>
      %153 = arith.mulf %152, %151 : vector<8x384xf32>
      %154 = math.tanh %153 : vector<8x384xf32>
      %cst_58 = arith.constant 5.000000e-01 : f32
      %155 = vector.broadcast %cst_58 : f32 to vector<8x384xf32>
      %156 = arith.mulf %155, %154 : vector<8x384xf32>
      %cst_59 = arith.constant 5.000000e-01 : f32
      %157 = vector.broadcast %cst_59 : f32 to vector<8x384xf32>
      %158 = arith.addf %156, %157 : vector<8x384xf32>
      %159 = vector.extract_strided_slice %158 {offsets = [0, 0], sizes = [8, 128], strides = [1, 1]} : vector<8x384xf32> to vector<8x128xf32>
      %160 = vector.extract_strided_slice %158 {offsets = [0, 128], sizes = [8, 128], strides = [1, 1]} : vector<8x384xf32> to vector<8x128xf32>
      %161 = vector.extract_strided_slice %158 {offsets = [0, 256], sizes = [8, 128], strides = [1, 1]} : vector<8x384xf32> to vector<8x128xf32>
      %162 = vector.extract_strided_slice %150 {offsets = [0, 384], sizes = [8, 128], strides = [1, 1]} : vector<8x512xf32> to vector<8x128xf32>
      %163 = math.tanh %162 : vector<8x128xf32>
      %164 = arith.mulf %160, %142 : vector<8x128xf32>
      %165 = arith.mulf %159, %163 : vector<8x128xf32>
      %166 = arith.addf %164, %165 : vector<8x128xf32>
      %167 = math.tanh %166 : vector<8x128xf32>
      %168 = arith.mulf %161, %167 : vector<8x128xf32>
      %169 = arith.index_cast %135 : i32 to index
      %c0_60 = arith.constant 0 : index
      %c0_61 = arith.constant 0 : index
      %170 = vector.load %arg7[%169, %c0_60, %c0_61] : memref<8x8x128xf32, #tpu.memory_space<vmem>>, vector<1x8x128xf32>
      %171 = vector.shape_cast %170 : vector<1x8x128xf32> to vector<8x128xf32>
      %172 = vector.shape_cast %168 : vector<8x128xf32> to vector<1x8x128xf32>
      tpu.vector_store %arg7[%169, %c0_60, %c0_61], %172 {strides = array<i32>} : memref<8x8x128xf32, #tpu.memory_space<vmem>>, vector<1x8x128xf32>,
      scf.yield %168, %166 : vector<8x128xf32>, vector<8x128xf32>
    }
    %c2_i32_10 = arith.constant 2 : i32
    %c0_11 = arith.constant 0 : index
    %c0_12 = arith.constant 0 : index
    %c0_13 = arith.constant 0 : index
    %11 = vector.load %arg8[%c0_11, %c0_12, %c0_13] : memref<2x8x128xf32, #tpu.memory_space<vmem>>, vector<1x8x128xf32>
    %12 = vector.shape_cast %11 : vector<1x8x128xf32> to vector<8x128xf32>
    %13 = vector.shape_cast %10#0 : vector<8x128xf32> to vector<1x8x128xf32>
    tpu.vector_store %arg8[%c0_11, %c0_12, %c0_13], %13 {strides = array<i32>} : memref<2x8x128xf32, #tpu.memory_space<vmem>>, vector<1x8x128xf32>,
    %c1_14 = arith.constant 1 : index
    %c0_15 = arith.constant 0 : index
    %c0_16 = arith.constant 0 : index
    %14 = vector.load %arg8[%c1_14, %c0_15, %c0_16] : memref<2x8x128xf32, #tpu.memory_space<vmem>>, vector<1x8x128xf32>
    %15 = vector.shape_cast %14 : vector<1x8x128xf32> to vector<8x128xf32>
    %16 = vector.shape_cast %10#1 : vector<8x128xf32> to vector<1x8x128xf32>
    tpu.vector_store %arg8[%c1_14, %c0_15, %c0_16], %16 {strides = array<i32>} : memref<2x8x128xf32, #tpu.memory_space<vmem>>, vector<1x8x128xf32>,
    return
  }
  func.func @transform_0(%arg0: i32, %arg1: i32) -> (i32, i32, i32) {
    %c0_i32 = arith.constant 0 : i32
    %c0_i32_0 = arith.constant 0 : i32
    return %arg1, %arg0, %c0_i32 : i32, i32, i32
  }
  func.func @transform_1(%arg0: i32, %arg1: i32) -> (i32, i32, i32) {
    %c0_i32 = arith.constant 0 : i32
    %c0_i32_0 = arith.constant 0 : i32
    return %arg1, %arg0, %c0_i32 : i32, i32, i32
  }
  func.func @transform_2(%arg0: i32, %arg1: i32) -> (i32, i32, i32) {
    %c0_i32 = arith.constant 0 : i32
    %c0_i32_0 = arith.constant 0 : i32
    %c0_i32_1 = arith.constant 0 : i32
    return %c0_i32, %arg0, %c0_i32_0 : i32, i32, i32
  }
  func.func @transform_3(%arg0: i32, %arg1: i32) -> (i32, i32) {
    %c0_i32 = arith.constant 0 : i32
    %c0_i32_0 = arith.constant 0 : i32
    %c0_i32_1 = arith.constant 0 : i32
    return %c0_i32, %c0_i32_0 : i32, i32
  }
  func.func @transform_4(%arg0: i32, %arg1: i32) -> (i32, i32) {
    %c0_i32 = arith.constant 0 : i32
    %c0_i32_0 = arith.constant 0 : i32
    %c0_i32_1 = arith.constant 0 : i32
    return %c0_i32, %c0_i32_0 : i32, i32
  }
  func.func @transform_5(%arg0: i32, %arg1: i32) -> (i32, i32, i32) {
    %c0_i32 = arith.constant 0 : i32
    %c0_i32_0 = arith.constant 0 : i32
    return %arg1, %arg0, %c0_i32 : i32, i32, i32
  }
  func.func @transform_6(%arg0: i32, %arg1: i32) -> (i32, i32, i32) {
    %c0_i32 = arith.constant 0 : i32
    %c0_i32_0 = arith.constant 0 : i32
    %c0_i32_1 = arith.constant 0 : i32
    return %c0_i32, %arg0, %c0_i32_0 : i32, i32, i32
  }
}

</mosaic_0001>

<llo_original>
// kernel: rnn_lstm_pallas.1
$region0: #{rnn_lstm_pallas.1}
  #allocation0 [shape = 'u32[]', space=smem, size = 0x4, offset = 0x4, fixed_abs, tag = 'smem constant byte address 0x4 - core index']
  #allocation1 [shape = 'u32[72,128]{1,0:T(1,128)}', space=vmem, size = 0x9000, scoped, tag = 'internal scratch']
  %s0 = inlined_call_operand.vmem [shape: bf16[8,8,512], index: 0, kind: input, shape index: {}]
  %s1 = inlined_call_operand.vmem [shape: f32[8,8,1], index: 1, kind: input, shape index: {}]
  %s2 = inlined_call_operand.vmem [shape: f32[2,8,128], index: 2, kind: input, shape index: {}, may-alias: {2,6}]
  %s3 = inlined_call_operand.vmem [shape: f32[128,512], index: 3, kind: input, shape index: {}]
  %s4 = inlined_call_operand.vmem [shape: f32[1,512], index: 4, kind: input, shape index: {}]
  %s5 = inlined_call_operand.vmem [shape: f32[8,8,128], index: 5, kind: output, shape index: {0}]
  %s6 = inlined_call_operand.vmem [shape: f32[2,8,128], index: 6, kind: output, shape index: {1}, may-alias: {2,6}]
  %7 = xla_tuple %s5, %s6
  %s8 = sld [smem:[#allocation0]]
  $region49: #{rnn_lstm_pallas.1} parent=0
    _
  %s10 = ssub.s32 1, %s8
  %s11 = scalar_select 0, %s10, %s8
  // Predicated region
  $region2: #{rnn_lstm_pallas.1} parent=0 // pred_check
    _
  $region3: #{rnn_lstm_pallas.1} parent=0 // pred_check_branch
    %13 = sbr.rel (0) target = $region5
  $region4: #{rnn_lstm_pallas.1} parent=0 // pred_region
    _
  $region5: #{rnn_lstm_pallas.1} parent=0 // pred_fallthru
    _
  // Predicated region
  $region6: #{rnn_lstm_pallas.1} parent=0 // pred_check
    _
  $region7: #{rnn_lstm_pallas.1} parent=0 // pred_check_branch
    %15 = sbr.rel (0) target = $region9
  $region8: #{rnn_lstm_pallas.1} parent=0 // pred_region
    _
  $region9: #{rnn_lstm_pallas.1} parent=0 // pred_fallthru
    _
  // Predicated region
  $region10: #{rnn_lstm_pallas.1} parent=0 // pred_check
    _
  $region11: #{rnn_lstm_pallas.1} parent=0 // pred_check_branch
    %17 = sbr.rel (0) target = $region13
  $region12: #{rnn_lstm_pallas.1} parent=0 // pred_region
    _
  $region13: #{rnn_lstm_pallas.1} parent=0 // pred_fallthru
    _
  // Predicated region
  $region14: #{rnn_lstm_pallas.1} parent=0 // pred_check
    _
  $region15: #{rnn_lstm_pallas.1} parent=0 // pred_check_branch
    %19 = sbr.rel (0) target = $region17
  $region16: #{rnn_lstm_pallas.1} parent=0 // pred_region
    _
  $region17: #{rnn_lstm_pallas.1} parent=0 // pred_fallthru
    _
  // Predicated region
  $region18: #{rnn_lstm_pallas.1} parent=0 // pred_check
    _
  $region19: #{rnn_lstm_pallas.1} parent=0 // pred_check_branch
    %21 = sbr.rel (0) target = $region21
  $region20: #{rnn_lstm_pallas.1} parent=0 // pred_region
    _
  $region21: #{rnn_lstm_pallas.1} parent=0 // pred_fallthru
    _
  %p22 = scmp.eq.s32.totalorder 0, 0
  // Predicated region
  $region22: #{rnn_lstm_pallas.1} parent=0 // pred_check
    %p23 = pneg %p22
  $region23: #{rnn_lstm_pallas.1} parent=0 // pred_check_branch
    %25 = sbr.rel (%p23) target = $region25
  $region24: #{rnn_lstm_pallas.1} parent=0 // pred_region
    %v26 = vld [vmem:[%s2] sm:$0xff]
    %v27 = vld [vmem:[%s2 + $0x8] sm:$0xff]
    %28 = vst [vmem:[%s6] sm:$0xff] %v26
    %29 = vst [vmem:[%s6 + $0x8] sm:$0xff] %v27
  $region25: #{rnn_lstm_pallas.1} parent=0 // pred_fallthru
    _
  %v30 = vld [vmem:[%s3] sm:$0xff]
  %v31 = vld [vmem:[%s3 + $0x8] sm:$0xff]
  %v32 = vld [vmem:[%s3 + $0x10] sm:$0xff]
  %v33 = vld [vmem:[%s3 + $0x18] sm:$0xff]
  %v34 = vld [vmem:[%s3 + $0x20] sm:$0xff]
  %v35 = vld [vmem:[%s3 + $0x28] sm:$0xff]
  %v36 = vld [vmem:[%s3 + $0x30] sm:$0xff]
  %v37 = vld [vmem:[%s3 + $0x38] sm:$0xff]
  %v38 = vld [vmem:[%s3 + $0x40] sm:$0xff]
  %v39 = vld [vmem:[%s3 + $0x48] sm:$0xff]
  %v40 = vld [vmem:[%s3 + $0x50] sm:$0xff]
  %v41 = vld [vmem:[%s3 + $0x58] sm:$0xff]
  %v42 = vld [vmem:[%s3 + $0x60] sm:$0xff]
  %v43 = vld [vmem:[%s3 + $0x68] sm:$0xff]
  %v44 = vld [vmem:[%s3 + $0x70] sm:$0xff]
  %v45 = vld [vmem:[%s3 + $0x78] sm:$0xff]
  %v46 = vld [vmem:[%s3 + $0x80] sm:$0xff]
  %v47 = vld [vmem:[%s3 + $0x88] sm:$0xff]
  %v48 = vld [vmem:[%s3 + $0x90] sm:$0xff]
  %v49 = vld [vmem:[%s3 + $0x98] sm:$0xff]
  %v50 = vld [vmem:[%s3 + $0xa0] sm:$0xff]
  %v51 = vld [vmem:[%s3 + $0xa8] sm:$0xff]
  %v52 = vld [vmem:[%s3 + $0xb0] sm:$0xff]
  %v53 = vld [vmem:[%s3 + $0xb8] sm:$0xff]
  %v54 = vld [vmem:[%s3 + $0xc0] sm:$0xff]
  %v55 = vld [vmem:[%s3 + $0xc8] sm:$0xff]
  %v56 = vld [vmem:[%s3 + $0xd0] sm:$0xff]
  %v57 = vld [vmem:[%s3 + $0xd8] sm:$0xff]
  %v58 = vld [vmem:[%s3 + $0xe0] sm:$0xff]
  %v59 = vld [vmem:[%s3 + $0xe8] sm:$0xff]
  %v60 = vld [vmem:[%s3 + $0xf0] sm:$0xff]
  %v61 = vld [vmem:[%s3 + $0xf8] sm:$0xff]
  %v62 = vld [vmem:[%s3 + $0x100] sm:$0xff]
  %v63 = vld [vmem:[%s3 + $0x108] sm:$0xff]
  %v64 = vld [vmem:[%s3 + $0x110] sm:$0xff]
  %v65 = vld [vmem:[%s3 + $0x118] sm:$0xff]
  %v66 = vld [vmem:[%s3 + $0x120] sm:$0xff]
  %v67 = vld [vmem:[%s3 + $0x128] sm:$0xff]
  %v68 = vld [vmem:[%s3 + $0x130] sm:$0xff]
  %v69 = vld [vmem:[%s3 + $0x138] sm:$0xff]
  %v70 = vld [vmem:[%s3 + $0x140] sm:$0xff]
  %v71 = vld [vmem:[%s3 + $0x148] sm:$0xff]
  %v72 = vld [vmem:[%s3 + $0x150] sm:$0xff]
  %v73 = vld [vmem:[%s3 + $0x158] sm:$0xff]
  %v74 = vld [vmem:[%s3 + $0x160] sm:$0xff]
  %v75 = vld [vmem:[%s3 + $0x168] sm:$0xff]
  %v76 = vld [vmem:[%s3 + $0x170] sm:$0xff]
  %v77 = vld [vmem:[%s3 + $0x178] sm:$0xff]
  %v78 = vld [vmem:[%s3 + $0x180] sm:$0xff]
  %v79 = vld [vmem:[%s3 + $0x188] sm:$0xff]
  %v80 = vld [vmem:[%s3 + $0x190] sm:$0xff]
  %v81 = vld [vmem:[%s3 + $0x198] sm:$0xff]
  %v82 = vld [vmem:[%s3 + $0x1a0] sm:$0xff]
  %v83 = vld [vmem:[%s3 + $0x1a8] sm:$0xff]
  %v84 = vld [vmem:[%s3 + $0x1b0] sm:$0xff]
  %v85 = vld [vmem:[%s3 + $0x1b8] sm:$0xff]
  %v86 = vld [vmem:[%s3 + $0x1c0] sm:$0xff]
  %v87 = vld [vmem:[%s3 + $0x1c8] sm:$0xff]
  %v88 = vld [vmem:[%s3 + $0x1d0] sm:$0xff]
  %v89 = vld [vmem:[%s3 + $0x1d8] sm:$0xff]
  %v90 = vld [vmem:[%s3 + $0x1e0] sm:$0xff]
  %v91 = vld [vmem:[%s3 + $0x1e8] sm:$0xff]
  %v92 = vld [vmem:[%s3 + $0x1f0] sm:$0xff]
  %v93 = vld [vmem:[%s3 + $0x1f8] sm:$0xff]
  %v94 = vld [vmem:[%s4] sm:$0xf]
  %v95 = vld [vmem:[%s6] sm:$0xff]
  %s96 = scalar_lea.vmem %s6, 8
  %v97 = vld [vmem:[%s96] sm:$0xff]
  loop: start=0, step=1, limit=2
  $region26: #{rnn_lstm_pallas.1} parent=0 // loop_pre_header
    _
  $region27: #{rnn_lstm_pallas.1} parent=0 // loop_header
    %s99 = sphi 0, %s103
    %p100 = scmp.ge.s32.totalorder %s99, 2
    %v104 = vphi %v95, %v624
    %v105 = vphi %v97, %v622
  $region28: #{rnn_lstm_pallas.1} parent=0 // loop_header_branch
    %102 = sbr.rel (%p100) target = $region32
  $region29: #{rnn_lstm_pallas.1} parent=0 // loop_body
    %s106 = smul.u32 %s99, 4
    %s107 = smul.u32 %s106, 8
    %s108 = scalar_lea.vmem %s1, %s107
    %v109 = vld [vmem:[%s108] sm:$0xff]
    %111 = vset.pattern.permute.xlu0 0
    %112 = vperm.xlu0 %111, %v109
    %v113 = vpop.permute.xlu0 %112
    %v115 = vmul.f32 %v104, %v113
    %v116 = vmul.f32 %v105, %v113
    %s117 = smul.u32 %s106, 4
    %s118 = smul.addr %s117, 4
    %s119 = scalar_lea.vmem %s0, %s118
    %v120 = vld [vmem:[%s119] sm:$0xff]
    %v121 = vld [vmem:[%s119 + $0x8] sm:$0xff]
    %v122 = vunpack.c.l.bf16 %v120
    %v123 = vunpack.c.h.bf16 %v120
    %v124 = vunpack.c.l.bf16 %v121
    %v125 = vunpack.c.h.bf16 %v121
    %v127 = vperm.slane %v94, 0
    %v128 = vperm.slane %v94, 1
    %v129 = vperm.slane %v94, 2
    %v130 = vperm.slane %v94, 3
    %v135 = vadd.f32 %v122, %v127
    %v136 = vadd.f32 %v123, %v128
    %v137 = vadd.f32 %v124, %v129
    %v138 = vadd.f32 %v125, %v130
    %139 = vmatpush.msra.mxu0 %v90
    %140 = vmatpush.msra.mxu0 %v86
    %141 = vmatpush.msra.mxu0 %v82
    %142 = vmatpush.msra.mxu0 %v78
    %143 = vmatpush.msra.mxu0 %v74
    %144 = vmatpush.msra.mxu0 %v70
    %145 = vmatpush.msra.mxu0 %v66
    %146 = vmatpush.msra.mxu0 %v62
    %147 = vmatpush.msra.mxu0 %v58
    %148 = vmatpush.msra.mxu0 %v54
    %149 = vmatpush.msra.mxu0 %v50
    %150 = vmatpush.msra.mxu0 %v46
    %151 = vmatpush.msra.mxu0 %v42
    %152 = vmatpush.msra.mxu0 %v38
    %153 = vmatpush.msra.mxu0 %v34
    %154 = vmatpush.msra.mxu0 %v30
    %155 = vmatmul.f32.gmra.mxu0 %v115
    %v156 = vpop.f32.mrf.mxu0
    %v157 = vadd.f32 0.0, %v156
    %158 = vdwg.mxu0
    %159 = vmatpush.msra.mxu0 %v91
    %160 = vmatpush.msra.mxu0 %v87
    %161 = vmatpush.msra.mxu0 %v83
    %162 = vmatpush.msra.mxu0 %v79
    %163 = vmatpush.msra.mxu0 %v75
    %164 = vmatpush.msra.mxu0 %v71
    %165 = vmatpush.msra.mxu0 %v67
    %166 = vmatpush.msra.mxu0 %v63
    %167 = vmatpush.msra.mxu0 %v59
    %168 = vmatpush.msra.mxu0 %v55
    %169 = vmatpush.msra.mxu0 %v51
    %170 = vmatpush.msra.mxu0 %v47
    %171 = vmatpush.msra.mxu0 %v43
    %172 = vmatpush.msra.mxu0 %v39
    %173 = vmatpush.msra.mxu0 %v35
    %174 = vmatpush.msra.mxu0 %v31
    %175 = vmatmul.f32.gmra.mxu0 %v115
    %v176 = vpop.f32.mrf.mxu0
    %v177 = vadd.f32 0.0, %v176
    %178 = vdwg.mxu0
    %179 = vmatpush.msra.mxu0 %v92
    %180 = vmatpush.msra.mxu0 %v88
    %181 = vmatpush.msra.mxu0 %v84
    %182 = vmatpush.msra.mxu0 %v80
    %183 = vmatpush.msra.mxu0 %v76
    %184 = vmatpush.msra.mxu0 %v72
    %185 = vmatpush.msra.mxu0 %v68
    %186 = vmatpush.msra.mxu0 %v64
    %187 = vmatpush.msra.mxu0 %v60
    %188 = vmatpush.msra.mxu0 %v56
    %189 = vmatpush.msra.mxu0 %v52
    %190 = vmatpush.msra.mxu0 %v48
    %191 = vmatpush.msra.mxu0 %v44
    %192 = vmatpush.msra.mxu0 %v40
    %193 = vmatpush.msra.mxu0 %v36
    %194 = vmatpush.msra.mxu0 %v32
    %195 = vmatmul.f32.gmra.mxu0 %v115
    %v196 = vpop.f32.mrf.mxu0
    %v197 = vadd.f32 0.0, %v196
    %198 = vdwg.mxu0
    %199 = vmatpush.msra.mxu0 %v93
    %200 = vmatpush.msra.mxu0 %v89
    %201 = vmatpush.msra.mxu0 %v85
    %202 = vmatpush.msra.mxu0 %v81
    %203 = vmatpush.msra.mxu0 %v77
    %204 = vmatpush.msra.mxu0 %v73
    %205 = vmatpush.msra.mxu0 %v69
    %206 = vmatpush.msra.mxu0 %v65
    %207 = vmatpush.msra.mxu0 %v61
    %208 = vmatpush.msra.mxu0 %v57
    %209 = vmatpush.msra.mxu0 %v53
    %210 = vmatpush.msra.mxu0 %v49
    %211 = vmatpush.msra.mxu0 %v45
    %212 = vmatpush.msra.mxu0 %v41
    %213 = vmatpush.msra.mxu0 %v37
    %214 = vmatpush.msra.mxu0 %v33
    %215 = vmatmul.f32.gmra.mxu0 %v115
    %v216 = vpop.f32.mrf.mxu0
    %v217 = vadd.f32 0.0, %v216
    %218 = vdwg.mxu0
    %v219 = vadd.f32 %v135, %v157
    %v220 = vadd.f32 %v136, %v177
    %v221 = vadd.f32 %v137, %v197
    %v222 = vadd.f32 %v138, %v217
    %v223 = vmul.f32 %v219, 0.5
    %v224 = vmul.f32 %v220, 0.5
    %v225 = vmul.f32 %v221, 0.5
    %v226 = vtanh.pop %v223
    %v227 = vtanh.pop %v224
    %v228 = vtanh.pop %v225
    %v229 = vmul.f32 %v226, 0.5
    %v230 = vmul.f32 %v227, 0.5
    %v231 = vmul.f32 %v228, 0.5
    %v232 = vadd.f32 %v229, 0.5
    %v233 = vadd.f32 %v230, 0.5
    %v234 = vadd.f32 %v231, 0.5
    %v235 = vtanh.pop %v222
    %v236 = vmul.f32 %v233, %v116
    %v237 = vmul.f32 %v232, %v235
    %v238 = vadd.f32 %v236, %v237
    %v239 = vtanh.pop %v238
    %v240 = vmul.f32 %v234, %v239
    %s241 = scalar_lea.vmem %s5, %s107
    %242 = vst [vmem:[%s241] sm:$0xff] %v240
    %s243 = sadd.s32 %s106, 1
    %s244 = smul.u32 %s243, 8
    %s245 = scalar_lea.vmem %s1, %s244
    %v246 = vld [vmem:[%s245] sm:$0xff]
    %248 = vset.pattern.permute.xlu0 0
    %249 = vperm.xlu0 %248, %v246
    %v250 = vpop.permute.xlu0 %249
    %v252 = vmul.f32 %v240, %v250
    %v253 = vmul.f32 %v238, %v250
    %s254 = smul.u32 %s243, 4
    %s255 = smul.addr %s254, 4
    %s256 = scalar_lea.vmem %s0, %s255
    %v257 = vld [vmem:[%s256] sm:$0xff]
    %v258 = vld [vmem:[%s256 + $0x8] sm:$0xff]
    %v259 = vunpack.c.l.bf16 %v257
    %v260 = vunpack.c.h.bf16 %v257
    %v261 = vunpack.c.l.bf16 %v258
    %v262 = vunpack.c.h.bf16 %v258
    %v263 = vadd.f32 %v259, %v127
    %v264 = vadd.f32 %v260, %v128
    %v265 = vadd.f32 %v261, %v129
    %v266 = vadd.f32 %v262, %v130
    %267 = vmatpush.msra.mxu0 %v90
    %268 = vmatpush.msra.mxu0 %v86
    %269 = vmatpush.msra.mxu0 %v82
    %270 = vmatpush.msra.mxu0 %v78
    %271 = vmatpush.msra.mxu0 %v74
    %272 = vmatpush.msra.mxu0 %v70
    %273 = vmatpush.msra.mxu0 %v66
    %274 = vmatpush.msra.mxu0 %v62
    %275 = vmatpush.msra.mxu0 %v58
    %276 = vmatpush.msra.mxu0 %v54
    %277 = vmatpush.msra.mxu0 %v50
    %278 = vmatpush.msra.mxu0 %v46
    %279 = vmatpush.msra.mxu0 %v42
    %280 = vmatpush.msra.mxu0 %v38
    %281 = vmatpush.msra.mxu0 %v34
    %282 = vmatpush.msra.mxu0 %v30
    %283 = vmatmul.f32.gmra.mxu0 %v252
    %v284 = vpop.f32.mrf.mxu0
    %v285 = vadd.f32 0.0, %v284
    %286 = vdwg.mxu0
    %287 = vmatpush.msra.mxu0 %v91
    %288 = vmatpush.msra.mxu0 %v87
    %289 = vmatpush.msra.mxu0 %v83
    %290 = vmatpush.msra.mxu0 %v79
    %291 = vmatpush.msra.mxu0 %v75
    %292 = vmatpush.msra.mxu0 %v71
    %293 = vmatpush.msra.mxu0 %v67
    %294 = vmatpush.msra.mxu0 %v63
    %295 = vmatpush.msra.mxu0 %v59
    %296 = vmatpush.msra.mxu0 %v55
    %297 = vmatpush.msra.mxu0 %v51
    %298 = vmatpush.msra.mxu0 %v47
    %299 = vmatpush.msra.mxu0 %v43
    %300 = vmatpush.msra.mxu0 %v39
    %301 = vmatpush.msra.mxu0 %v35
    %302 = vmatpush.msra.mxu0 %v31
    %303 = vmatmul.f32.gmra.mxu0 %v252
    %v304 = vpop.f32.mrf.mxu0
    %v305 = vadd.f32 0.0, %v304
    %306 = vdwg.mxu0
    %307 = vmatpush.msra.mxu0 %v92
    %308 = vmatpush.msra.mxu0 %v88
    %309 = vmatpush.msra.mxu0 %v84
    %310 = vmatpush.msra.mxu0 %v80
    %311 = vmatpush.msra.mxu0 %v76
    %312 = vmatpush.msra.mxu0 %v72
    %313 = vmatpush.msra.mxu0 %v68
    %314 = vmatpush.msra.mxu0 %v64
    %315 = vmatpush.msra.mxu0 %v60
    %316 = vmatpush.msra.mxu0 %v56
    %317 = vmatpush.msra.mxu0 %v52
    %318 = vmatpush.msra.mxu0 %v48
    %319 = vmatpush.msra.mxu0 %v44
    %320 = vmatpush.msra.mxu0 %v40
    %321 = vmatpush.msra.mxu0 %v36
    %322 = vmatpush.msra.mxu0 %v32
    %323 = vmatmul.f32.gmra.mxu0 %v252
    %v324 = vpop.f32.mrf.mxu0
    %v325 = vadd.f32 0.0, %v324
    %326 = vdwg.mxu0
    %327 = vmatpush.msra.mxu0 %v93
    %328 = vmatpush.msra.mxu0 %v89
    %329 = vmatpush.msra.mxu0 %v85
    %330 = vmatpush.msra.mxu0 %v81
    %331 = vmatpush.msra.mxu0 %v77
    %332 = vmatpush.msra.mxu0 %v73
    %333 = vmatpush.msra.mxu0 %v69
    %334 = vmatpush.msra.mxu0 %v65
    %335 = vmatpush.msra.mxu0 %v61
    %336 = vmatpush.msra.mxu0 %v57
    %337 = vmatpush.msra.mxu0 %v53
    %338 = vmatpush.msra.mxu0 %v49
    %339 = vmatpush.msra.mxu0 %v45
    %340 = vmatpush.msra.mxu0 %v41
    %341 = vmatpush.msra.mxu0 %v37
    %342 = vmatpush.msra.mxu0 %v33
    %343 = vmatmul.f32.gmra.mxu0 %v252
    %v344 = vpop.f32.mrf.mxu0
    %v345 = vadd.f32 0.0, %v344
    %346 = vdwg.mxu0
    %v347 = vadd.f32 %v263, %v285
    %v348 = vadd.f32 %v264, %v305
    %v349 = vadd.f32 %v265, %v325
    %v350 = vadd.f32 %v266, %v345
    %v351 = vmul.f32 %v347, 0.5
    %v352 = vmul.f32 %v348, 0.5
    %v353 = vmul.f32 %v349, 0.5
    %v354 = vtanh.pop %v351
    %v355 = vtanh.pop %v352
    %v356 = vtanh.pop %v353
    %v357 = vmul.f32 %v354, 0.5
    %v358 = vmul.f32 %v355, 0.5
    %v359 = vmul.f32 %v356, 0.5
    %v360 = vadd.f32 %v357, 0.5
    %v361 = vadd.f32 %v358, 0.5
    %v362 = vadd.f32 %v359, 0.5
    %v363 = vtanh.pop %v350
    %v364 = vmul.f32 %v361, %v253
    %v365 = vmul.f32 %v360, %v363
    %v366 = vadd.f32 %v364, %v365
    %v367 = vtanh.pop %v366
    %v368 = vmul.f32 %v362, %v367
    %s369 = scalar_lea.vmem %s5, %s244
    %370 = vst [vmem:[%s369] sm:$0xff] %v368
    %s371 = sadd.s32 %s106, 2
    %s372 = smul.u32 %s371, 8
    %s373 = scalar_lea.vmem %s1, %s372
    %v374 = vld [vmem:[%s373] sm:$0xff]
    %376 = vset.pattern.permute.xlu0 0
    %377 = vperm.xlu0 %376, %v374
    %v378 = vpop.permute.xlu0 %377
    %v380 = vmul.f32 %v368, %v378
    %v381 = vmul.f32 %v366, %v378
    %s382 = smul.u32 %s371, 4
    %s383 = smul.addr %s382, 4
    %s384 = scalar_lea.vmem %s0, %s383
    %v385 = vld [vmem:[%s384] sm:$0xff]
    %v386 = vld [vmem:[%s384 + $0x8] sm:$0xff]
    %v387 = vunpack.c.l.bf16 %v385
    %v388 = vunpack.c.h.bf16 %v385
    %v389 = vunpack.c.l.bf16 %v386
    %v390 = vunpack.c.h.bf16 %v386
    %v391 = vadd.f32 %v387, %v127
    %v392 = vadd.f32 %v388, %v128
    %v393 = vadd.f32 %v389, %v129
    %v394 = vadd.f32 %v390, %v130
    %395 = vmatpush.msra.mxu0 %v90
    %396 = vmatpush.msra.mxu0 %v86
    %397 = vmatpush.msra.mxu0 %v82
    %398 = vmatpush.msra.mxu0 %v78
    %399 = vmatpush.msra.mxu0 %v74
    %400 = vmatpush.msra.mxu0 %v70
    %401 = vmatpush.msra.mxu0 %v66
    %402 = vmatpush.msra.mxu0 %v62
    %403 = vmatpush.msra.mxu0 %v58
    %404 = vmatpush.msra.mxu0 %v54
    %405 = vmatpush.msra.mxu0 %v50
    %406 = vmatpush.msra.mxu0 %v46
    %407 = vmatpush.msra.mxu0 %v42
    %408 = vmatpush.msra.mxu0 %v38
    %409 = vmatpush.msra.mxu0 %v34
    %410 = vmatpush.msra.mxu0 %v30
    %411 = vmatmul.f32.gmra.mxu0 %v380
    %v412 = vpop.f32.mrf.mxu0
    %v413 = vadd.f32 0.0, %v412
    %414 = vdwg.mxu0
    %415 = vmatpush.msra.mxu0 %v91
    %416 = vmatpush.msra.mxu0 %v87
    %417 = vmatpush.msra.mxu0 %v83
    %418 = vmatpush.msra.mxu0 %v79
    %419 = vmatpush.msra.mxu0 %v75
    %420 = vmatpush.msra.mxu0 %v71
    %421 = vmatpush.msra.mxu0 %v67
    %422 = vmatpush.msra.mxu0 %v63
    %423 = vmatpush.msra.mxu0 %v59
    %424 = vmatpush.msra.mxu0 %v55
    %425 = vmatpush.msra.mxu0 %v51
    %426 = vmatpush.msra.mxu0 %v47
    %427 = vmatpush.msra.mxu0 %v43
    %428 = vmatpush.msra.mxu0 %v39
    %429 = vmatpush.msra.mxu0 %v35
    %430 = vmatpush.msra.mxu0 %v31
    %431 = vmatmul.f32.gmra.mxu0 %v380
    %v432 = vpop.f32.mrf.mxu0
    %v433 = vadd.f32 0.0, %v432
    %434 = vdwg.mxu0
    %435 = vmatpush.msra.mxu0 %v92
    %436 = vmatpush.msra.mxu0 %v88
    %437 = vmatpush.msra.mxu0 %v84
    %438 = vmatpush.msra.mxu0 %v80
    %439 = vmatpush.msra.mxu0 %v76
    %440 = vmatpush.msra.mxu0 %v72
    %441 = vmatpush.msra.mxu0 %v68
    %442 = vmatpush.msra.mxu0 %v64
    %443 = vmatpush.msra.mxu0 %v60
    %444 = vmatpush.msra.mxu0 %v56
    %445 = vmatpush.msra.mxu0 %v52
    %446 = vmatpush.msra.mxu0 %v48
    %447 = vmatpush.msra.mxu0 %v44
    %448 = vmatpush.msra.mxu0 %v40
    %449 = vmatpush.msra.mxu0 %v36
    %450 = vmatpush.msra.mxu0 %v32
    %451 = vmatmul.f32.gmra.mxu0 %v380
    %v452 = vpop.f32.mrf.mxu0
    %v453 = vadd.f32 0.0, %v452
    %454 = vdwg.mxu0
    %455 = vmatpush.msra.mxu0 %v93
    %456 = vmatpush.msra.mxu0 %v89
    %457 = vmatpush.msra.mxu0 %v85
    %458 = vmatpush.msra.mxu0 %v81
    %459 = vmatpush.msra.mxu0 %v77
    %460 = vmatpush.msra.mxu0 %v73
    %461 = vmatpush.msra.mxu0 %v69
    %462 = vmatpush.msra.mxu0 %v65
    %463 = vmatpush.msra.mxu0 %v61
    %464 = vmatpush.msra.mxu0 %v57
    %465 = vmatpush.msra.mxu0 %v53
    %466 = vmatpush.msra.mxu0 %v49
    %467 = vmatpush.msra.mxu0 %v45
    %468 = vmatpush.msra.mxu0 %v41
    %469 = vmatpush.msra.mxu0 %v37
    %470 = vmatpush.msra.mxu0 %v33
    %471 = vmatmul.f32.gmra.mxu0 %v380
    %v472 = vpop.f32.mrf.mxu0
    %v473 = vadd.f32 0.0, %v472
    %474 = vdwg.mxu0
    %v475 = vadd.f32 %v391, %v413
    %v476 = vadd.f32 %v392, %v433
    %v477 = vadd.f32 %v393, %v453
    %v478 = vadd.f32 %v394, %v473
    %v479 = vmul.f32 %v475, 0.5
    %v480 = vmul.f32 %v476, 0.5
    %v481 = vmul.f32 %v477, 0.5
    %v482 = vtanh.pop %v479
    %v483 = vtanh.pop %v480
    %v484 = vtanh.pop %v481
    %v485 = vmul.f32 %v482, 0.5
    %v486 = vmul.f32 %v483, 0.5
    %v487 = vmul.f32 %v484, 0.5
    %v488 = vadd.f32 %v485, 0.5
    %v489 = vadd.f32 %v486, 0.5
    %v490 = vadd.f32 %v487, 0.5
    %v491 = vtanh.pop %v478
    %v492 = vmul.f32 %v489, %v381
    %v493 = vmul.f32 %v488, %v491
    %v494 = vadd.f32 %v492, %v493
    %v495 = vtanh.pop %v494
    %v496 = vmul.f32 %v490, %v495
    %s497 = scalar_lea.vmem %s5, %s372
    %498 = vst [vmem:[%s497] sm:$0xff] %v496
    %s499 = sadd.s32 %s106, 3
    %s500 = smul.u32 %s499, 8
    %s501 = scalar_lea.vmem %s1, %s500
    %v502 = vld [vmem:[%s501] sm:$0xff]
    %504 = vset.pattern.permute.xlu0 0
    %505 = vperm.xlu0 %504, %v502
    %v506 = vpop.permute.xlu0 %505
    %v508 = vmul.f32 %v496, %v506
    %v509 = vmul.f32 %v494, %v506
    %s510 = smul.u32 %s499, 4
    %s511 = smul.addr %s510, 4
    %s512 = scalar_lea.vmem %s0, %s511
    %v513 = vld [vmem:[%s512] sm:$0xff]
    %v514 = vld [vmem:[%s512 + $0x8] sm:$0xff]
    %v515 = vunpack.c.l.bf16 %v513
    %v516 = vunpack.c.h.bf16 %v513
    %v517 = vunpack.c.l.bf16 %v514
    %v518 = vunpack.c.h.bf16 %v514
    %v519 = vadd.f32 %v515, %v127
    %v520 = vadd.f32 %v516, %v128
    %v521 = vadd.f32 %v517, %v129
    %v522 = vadd.f32 %v518, %v130
    %523 = vmatpush.msra.mxu0 %v90
    %524 = vmatpush.msra.mxu0 %v86
    %525 = vmatpush.msra.mxu0 %v82
    %526 = vmatpush.msra.mxu0 %v78
    %527 = vmatpush.msra.mxu0 %v74
    %528 = vmatpush.msra.mxu0 %v70
    %529 = vmatpush.msra.mxu0 %v66
    %530 = vmatpush.msra.mxu0 %v62
    %531 = vmatpush.msra.mxu0 %v58
    %532 = vmatpush.msra.mxu0 %v54
    %533 = vmatpush.msra.mxu0 %v50
    %534 = vmatpush.msra.mxu0 %v46
    %535 = vmatpush.msra.mxu0 %v42
    %536 = vmatpush.msra.mxu0 %v38
    %537 = vmatpush.msra.mxu0 %v34
    %538 = vmatpush.msra.mxu0 %v30
    %539 = vmatmul.f32.gmra.mxu0 %v508
    %v540 = vpop.f32.mrf.mxu0
    %v541 = vadd.f32 0.0, %v540
    %542 = vdwg.mxu0
    %543 = vmatpush.msra.mxu0 %v91
    %544 = vmatpush.msra.mxu0 %v87
    %545 = vmatpush.msra.mxu0 %v83
    %546 = vmatpush.msra.mxu0 %v79
    %547 = vmatpush.msra.mxu0 %v75
    %548 = vmatpush.msra.mxu0 %v71
    %549 = vmatpush.msra.mxu0 %v67
    %550 = vmatpush.msra.mxu0 %v63
    %551 = vmatpush.msra.mxu0 %v59
    %552 = vmatpush.msra.mxu0 %v55
    %553 = vmatpush.msra.mxu0 %v51
    %554 = vmatpush.msra.mxu0 %v47
    %555 = vmatpush.msra.mxu0 %v43
    %556 = vmatpush.msra.mxu0 %v39
    %557 = vmatpush.msra.mxu0 %v35
    %558 = vmatpush.msra.mxu0 %v31
    %559 = vmatmul.f32.gmra.mxu0 %v508
    %v560 = vpop.f32.mrf.mxu0
    %v561 = vadd.f32 0.0, %v560
    %562 = vdwg.mxu0
    %563 = vmatpush.msra.mxu0 %v92
    %564 = vmatpush.msra.mxu0 %v88
    %565 = vmatpush.msra.mxu0 %v84
    %566 = vmatpush.msra.mxu0 %v80
    %567 = vmatpush.msra.mxu0 %v76
    %568 = vmatpush.msra.mxu0 %v72
    %569 = vmatpush.msra.mxu0 %v68
    %570 = vmatpush.msra.mxu0 %v64
    %571 = vmatpush.msra.mxu0 %v60
    %572 = vmatpush.msra.mxu0 %v56
    %573 = vmatpush.msra.mxu0 %v52
    %574 = vmatpush.msra.mxu0 %v48
    %575 = vmatpush.msra.mxu0 %v44
    %576 = vmatpush.msra.mxu0 %v40
    %577 = vmatpush.msra.mxu0 %v36
    %578 = vmatpush.msra.mxu0 %v32
    %579 = vmatmul.f32.gmra.mxu0 %v508
    %v580 = vpop.f32.mrf.mxu0
    %v581 = vadd.f32 0.0, %v580
    %582 = vdwg.mxu0
    %583 = vmatpush.msra.mxu0 %v93
    %584 = vmatpush.msra.mxu0 %v89
    %585 = vmatpush.msra.mxu0 %v85
    %586 = vmatpush.msra.mxu0 %v81
    %587 = vmatpush.msra.mxu0 %v77
    %588 = vmatpush.msra.mxu0 %v73
    %589 = vmatpush.msra.mxu0 %v69
    %590 = vmatpush.msra.mxu0 %v65
    %591 = vmatpush.msra.mxu0 %v61
    %592 = vmatpush.msra.mxu0 %v57
    %593 = vmatpush.msra.mxu0 %v53
    %594 = vmatpush.msra.mxu0 %v49
    %595 = vmatpush.msra.mxu0 %v45
    %596 = vmatpush.msra.mxu0 %v41
    %597 = vmatpush.msra.mxu0 %v37
    %598 = vmatpush.msra.mxu0 %v33
    %599 = vmatmul.f32.gmra.mxu0 %v508
    %v600 = vpop.f32.mrf.mxu0
    %v601 = vadd.f32 0.0, %v600
    %602 = vdwg.mxu0
    %v603 = vadd.f32 %v519, %v541
    %v604 = vadd.f32 %v520, %v561
    %v605 = vadd.f32 %v521, %v581
    %v606 = vadd.f32 %v522, %v601
    %v607 = vmul.f32 %v603, 0.5
    %v608 = vmul.f32 %v604, 0.5
    %v609 = vmul.f32 %v605, 0.5
    %v610 = vtanh.pop %v607
    %v611 = vtanh.pop %v608
    %v612 = vtanh.pop %v609
    %v613 = vmul.f32 %v610, 0.5
    %v614 = vmul.f32 %v611, 0.5
    %v615 = vmul.f32 %v612, 0.5
    %v616 = vadd.f32 %v613, 0.5
    %v617 = vadd.f32 %v614, 0.5
    %v618 = vadd.f32 %v615, 0.5
    %v619 = vtanh.pop %v606
    %v620 = vmul.f32 %v617, %v509
    %v621 = vmul.f32 %v616, %v619
    %v622 = vadd.f32 %v620, %v621
    %v623 = vtanh.pop %v622
    %v624 = vmul.f32 %v618, %v623
    %s625 = scalar_lea.vmem %s5, %s500
    %626 = vst [vmem:[%s625] sm:$0xff] %v624
  $region30: #{rnn_lstm_pallas.1} parent=0 // loop_footer
    %s103 = sadd.s32 1, %s99
  $region31: #{rnn_lstm_pallas.1} parent=0 // loop_footer_branch
    %98 = sbr.rel target = $region27
  $region32: #{rnn_lstm_pallas.1} parent=0 // loop_exit
    _
  %627 = vst [vmem:[%s6] sm:$0xff] %v104
  %628 = vst [vmem:[%s96] sm:$0xff] %v105
  // Predicated region
  $region33: #{rnn_lstm_pallas.1} parent=0 // pred_check
    _
  $region34: #{rnn_lstm_pallas.1} parent=0 // pred_check_branch
    %630 = sbr.rel (0) target = $region36
  $region35: #{rnn_lstm_pallas.1} parent=0 // pred_region
    _
  $region36: #{rnn_lstm_pallas.1} parent=0 // pred_fallthru
    _
  // Predicated region
  $region37: #{rnn_lstm_pallas.1} parent=0 // pred_check
    _
  $region38: #{rnn_lstm_pallas.1} parent=0 // pred_check_branch
    %632 = sbr.rel (0) target = $region40
  $region39: #{rnn_lstm_pallas.1} parent=0 // pred_region
    _
  $region40: #{rnn_lstm_pallas.1} parent=0 // pred_fallthru
    _
  // Predicated region
  $region41: #{rnn_lstm_pallas.1} parent=0 // pred_check
    _
  $region42: #{rnn_lstm_pallas.1} parent=0 // pred_check_branch
    %634 = sbr.rel (0) target = $region44
  $region43: #{rnn_lstm_pallas.1} parent=0 // pred_region
    _
  $region44: #{rnn_lstm_pallas.1} parent=0 // pred_fallthru
    _
  // Predicated region
  $region45: #{rnn_lstm_pallas.1} parent=0 // pred_check
    _
  $region46: #{rnn_lstm_pallas.1} parent=0 // pred_check_branch
    %636 = sbr.rel (0) target = $region48
  $region47: #{rnn_lstm_pallas.1} parent=0 // pred_region
    _
  $region48: #{rnn_lstm_pallas.1} parent=0 // pred_fallthru
    _

</llo_original>
